<compile_context>
chip_gen: v6e
topology: v6e:2x2x1
jax: 0.10.0
libtpu: 0.0.40
codegen_flags: <defaults>
</compile_context>

<pallas_src>
import functools

import jax
import jax.numpy as jnp
from jax.experimental import pallas as pl
from jax.experimental.pallas import tpu as pltpu


LN_EPS = 1e-5          # PyTorch nn.LayerNorm default
NEG_BIG = -1e30        # f32 sentinel bias for padded action columns (keep f32!)


def _round_up(x, m):
    return (x + m - 1) // m * m


def _normalize(x, eps=LN_EPS):
    mu = jnp.mean(x, axis=-1, keepdims=True)
    var = jnp.mean((x - mu) ** 2, axis=-1, keepdims=True)
    return (x - mu) * jax.lax.rsqrt(var + eps)


def _layernorm(x, gamma, beta, eps=LN_EPS):
    return _normalize(x, eps) * gamma + beta


def mlp_policy_kernel(x_ref,
                      w1_ref, b1_ref, g1_ref, bt1_ref,
                      w2_ref, b2_ref, g2_ref, bt2_ref,
                      w3_ref, b3_ref,
                      out_ref):
    # f32 elementwise path; bf16 only at the MXU inputs (weights already bf16).
    x = x_ref[...].astype(jnp.float32)

    # feature_norm: affine folded into w1/b1 wrapper-side; normalize only.
    h = _normalize(x)

    # Linear(D, 256) + LayerNorm(256) + GELU (tanh approx -> EUP slot)
    h = jnp.dot(h.astype(jnp.bfloat16), w1_ref[...],
                preferred_element_type=jnp.float32) + b1_ref[...]
    h = _layernorm(h, g1_ref[...], bt1_ref[...])
    h = jax.nn.gelu(h, approximate=True)

    # Linear(256, 64) + LayerNorm(64) + GELU
    h = jnp.dot(h.astype(jnp.bfloat16), w2_ref[...],
                preferred_element_type=jnp.float32) + b2_ref[...]
    h = _layernorm(h, g2_ref[...], bt2_ref[...])
    h = jax.nn.gelu(h, approximate=True)

    # Linear(64, A_pad): padded columns carry a -1e30 bias, so exp() gives them
    # exactly zero probability -- no iota/where mask needed.
    logits = jnp.dot(h.astype(jnp.bfloat16), w3_ref[...],
                     preferred_element_type=jnp.float32) + b3_ref[...]

    # softmax over the last dim; reciprocal on the EUP (otherwise-idle slot).
    m = jnp.max(logits, axis=-1, keepdims=True)
    e = jnp.exp(logits - m)
    denom = jnp.sum(e, axis=-1, keepdims=True)
    probs = e * pl.reciprocal(denom, approx=True)

    out_ref[...] = probs.astype(out_ref.dtype)


def _orthogonal(key, out_dim, in_dim, dtype=jnp.float32):
    # torch.nn.init.orthogonal_ (gain=1: the module's `gain` is never forwarded
    # to orthogonal_) on an (out, in) weight, returned transposed as (in, out).
    w = jax.nn.initializers.orthogonal(scale=1.0)(key, (out_dim, in_dim), dtype)
    return jnp.transpose(w)


def make_params(obs_input_dim, num_actions, key):
    d_in = obs_input_dim + num_actions
    k1, k2, k3 = jax.random.split(key, 3)
    return dict(
        fn_gamma=jnp.ones((1, d_in), jnp.float32),
        fn_beta=jnp.zeros((1, d_in), jnp.float32),
        w1=_orthogonal(k1, 256, d_in),
        b1=jnp.zeros((1, 256), jnp.float32),
        ln1_g=jnp.ones((1, 256), jnp.float32),
        ln1_b=jnp.zeros((1, 256), jnp.float32),
        w2=_orthogonal(k2, 64, 256),
        b2=jnp.zeros((1, 64), jnp.float32),
        ln2_g=jnp.ones((1, 64), jnp.float32),
        ln2_b=jnp.zeros((1, 64), jnp.float32),
        w3=_orthogonal(k3, num_actions, 64),
        b3=jnp.zeros((1, num_actions), jnp.float32),
    )


@functools.partial(jax.jit, static_argnames=("block_rows",))
def mlp_policy_forward(local_observations, params, block_rows=2048):
    # local_observations: (B, 1, D) -> returns (softmax probs (B, A), None)
    B, one, D = local_observations.shape
    rows = B * one
    x = local_observations.reshape(rows, D)   # no wrapper cast; cast in-kernel

    A = params["w3"].shape[1]
    A_pad = _round_up(A, 128)                 # lane-dense output slab

    # Fold feature_norm's affine into the first Linear:
    #   (x_n * g + b) @ W1 + b1  ==  x_n @ (g^T * W1) + (b @ W1 + b1)
    fng = params["fn_gamma"].reshape(-1, 1)   # (D, 1)
    fnb = params["fn_beta"].reshape(1, -1)    # (1, D)
    w1f = fng * params["w1"]                  # (D, 256)
    b1f = fnb @ params["w1"] + params["b1"]   # (1, 256)

    # Zero-pad W3 columns; pad b3 with -1e30 (must stay f32 -- bf16 would
    # overflow) so padded columns softmax to exactly 0.
    w3p = jnp.pad(params["w3"], ((0, 0), (0, A_pad - A)))
    b3p = jnp.pad(params["b3"], ((0, 0), (0, A_pad - A)),
                  constant_values=NEG_BIG)

    # Pre-cast MXU weights to bf16 once; biases / LN params stay f32.
    w1b = w1f.astype(jnp.bfloat16)
    w2b = params["w2"].astype(jnp.bfloat16)
    w3b = w3p.astype(jnp.bfloat16)

    # Batch tile: multiple of 8 sublanes, capped at block_rows; pad rows so the
    # grid divides evenly.  (At block_rows=2048 per-tile VMEM is only a few MiB,
    # within every generation's default scoped VMEM; set vmem_limit_bytes if
    # sweeping higher on v5e/v7x.)
    tb = min(block_rows, _round_up(rows, 8))
    rows_pad = _round_up(rows, tb)
    if rows_pad != rows:
        x = jnp.pad(x, ((0, rows_pad - rows), (0, 0)))
    grid = (rows_pad // tb,)

    def const_spec(p):
        return pl.BlockSpec(p.shape, lambda i: (0, 0))

    args = (
        x,
        w1b, b1f, params["ln1_g"], params["ln1_b"],
        w2b, params["b2"], params["ln2_g"], params["ln2_b"],
        w3b, b3p,
    )
    in_specs = [pl.BlockSpec((tb, D), lambda i: (i, 0))]
    in_specs += [const_spec(p) for p in args[1:]]

    out = pl.pallas_call(
        mlp_policy_kernel,
        grid=grid,
        in_specs=in_specs,
        out_specs=pl.BlockSpec((tb, A_pad), lambda i: (i, 0)),
        out_shape=jax.ShapeDtypeStruct((rows_pad, A_pad), jnp.bfloat16),
        compiler_params=pltpu.CompilerParams(
            dimension_semantics=("parallel",)),
    )(*args)

    probs = out[:rows, :A].astype(jnp.float32).reshape(B, one, A)
    if one == 1:
        probs = jnp.squeeze(probs, axis=1)    # PyTorch .squeeze(1)
    return probs, None


def reference_forward(local_observations, params,
                      matmul_dtype=jnp.float32, gelu_approx=False):
    # Pure-JAX reference mirroring the PyTorch module (unfused feature_norm).
    def mm(a, w, b):
        return jnp.dot(a.astype(matmul_dtype), w.astype(matmul_dtype),
                       preferred_element_type=jnp.float32) + b

    x = local_observations.astype(jnp.float32)
    h = _layernorm(x, params["fn_gamma"], params["fn_beta"])
    h = mm(h, params["w1"], params["b1"])
    h = _layernorm(h, params["ln1_g"], params["ln1_b"])
    h = jax.nn.gelu(h, approximate=gelu_approx)
    h = mm(h, params["w2"], params["b2"])
    h = _layernorm(h, params["ln2_g"], params["ln2_b"])
    h = jax.nn.gelu(h, approximate=gelu_approx)
    logits = mm(h, params["w3"], params["b3"])
    probs = jax.nn.softmax(logits, axis=-1)
    return jnp.squeeze(probs, axis=1)


if __name__ == "__main__":
    obs_input_dim = 26
    num_actions = 6
    num_agents = 3          # stored on the PyTorch module, unused in forward
    batch = 8
    d_in = obs_input_dim + num_actions  # 32

    key = jax.random.PRNGKey(0)
    pkey, xkey, gkey = jax.random.split(key, 3)
    params = make_params(obs_input_dim, num_actions, pkey)

    # Perturb LayerNorm affine params away from the (1, 0) init so the
    # wrapper-side feature-norm folding path is actually exercised.
    ks = jax.random.split(gkey, 6)
    params["fn_gamma"] = 1.0 + 0.1 * jax.random.normal(ks[0], (1, d_in))
    params["fn_beta"] = 0.05 * jax.random.normal(ks[1], (1, d_in))
    params["ln1_g"] = 1.0 + 0.1 * jax.random.normal(ks[2], (1, 256))
    params["ln1_b"] = 0.05 * jax.random.normal(ks[3], (1, 256))
    params["ln2_g"] = 1.0 + 0.1 * jax.random.normal(ks[4], (1, 64))
    params["ln2_b"] = 0.05 * jax.random.normal(ks[5], (1, 64))

    # (B, 1, obs_input_dim + num_actions): squeeze(1) in forward implies dim1==1.
    local_obs = jax.random.normal(xkey, (batch, 1, d_in), dtype=jnp.float32)

    probs, hidden = mlp_policy_forward(local_obs, params)
    probs = jax.block_until_ready(probs)

    assert probs.shape == (batch, num_actions), probs.shape
    assert hidden is None
    # Rows sum to ~1 (bf16 output + approx-reciprocal softmax normalization).
    assert jnp.allclose(jnp.sum(probs, axis=-1), 1.0, atol=1e-2)

    # Tight check against a reference matching kernel numerics (bf16 matmuls,
    # tanh GELU); slack covers the bf16 output store + approx reciprocal.
    ref_match = reference_forward(local_obs, params,
                                  matmul_dtype=jnp.bfloat16, gelu_approx=True)
    assert jnp.allclose(probs, ref_match, atol=1.5e-2, rtol=1e-1), (
        float(jnp.max(jnp.abs(probs - ref_match))))
    # Looser sanity check against the full-f32 exact-erf PyTorch-faithful ref.
    ref_f32 = reference_forward(local_obs, params,
                                matmul_dtype=jnp.float32, gelu_approx=False)
    assert jnp.allclose(probs, ref_f32, atol=5e-2, rtol=5e-1), (
        float(jnp.max(jnp.abs(probs - ref_f32))))

    print("KERNEL_OK")
</pallas_src>

<mosaic_0001>
module attributes {stable_mosaic.version = 11 : i64} {
  func.func @mlp_policy_kernel(%arg0: i32, %arg1: memref<8x32xf32, #tpu.memory_space<vmem>>, %arg2: memref<32x256xbf16, #tpu.memory_space<vmem>>, %arg3: memref<1x256xf32, #tpu.memory_space<vmem>>, %arg4: memref<1x256xf32, #tpu.memory_space<vmem>>, %arg5: memref<1x256xf32, #tpu.memory_space<vmem>>, %arg6: memref<256x64xbf16, #tpu.memory_space<vmem>>, %arg7: memref<1x64xf32, #tpu.memory_space<vmem>>, %arg8: memref<1x64xf32, #tpu.memory_space<vmem>>, %arg9: memref<1x64xf32, #tpu.memory_space<vmem>>, %arg10: memref<64x128xbf16, #tpu.memory_space<vmem>>, %arg11: memref<1x128xf32, #tpu.memory_space<vmem>>, %arg12: memref<8x128xbf16, #tpu.memory_space<vmem>>) attributes {dimension_semantics = [#tpu.dimension_semantics<parallel>], iteration_bounds = array<i64: 1>, scalar_prefetch = 0 : i64, scratch_operands = 0 : i64, tpu.core_type = #tpu.core_type<tc>, window_params = [{transform_indices = @transform_0, window_bounds = array<i64: 8, 32>}, {pipeline_mode = #tpu.pipeline_mode<synchronous>, transform_indices = @transform_1, window_bounds = array<i64: 32, 256>}, {pipeline_mode = #tpu.pipeline_mode<synchronous>, transform_indices = @transform_2, window_bounds = array<i64: 1, 256>}, {pipeline_mode = #tpu.pipeline_mode<synchronous>, transform_indices = @transform_3, window_bounds = array<i64: 1, 256>}, {pipeline_mode = #tpu.pipeline_mode<synchronous>, transform_indices = @transform_4, window_bounds = array<i64: 1, 256>}, {pipeline_mode = #tpu.pipeline_mode<synchronous>, transform_indices = @transform_5, window_bounds = array<i64: 256, 64>}, {pipeline_mode = #tpu.pipeline_mode<synchronous>, transform_indices = @transform_6, window_bounds = array<i64: 1, 64>}, {pipeline_mode = #tpu.pipeline_mode<synchronous>, transform_indices = @transform_7, window_bounds = array<i64: 1, 64>}, {pipeline_mode = #tpu.pipeline_mode<synchronous>, transform_indices = @transform_8, window_bounds = array<i64: 1, 64>}, {pipeline_mode = #tpu.pipeline_mode<synchronous>, transform_indices = @transform_9, window_bounds = array<i64: 64, 128>}, {pipeline_mode = #tpu.pipeline_mode<synchronous>, transform_indices = @transform_10, window_bounds = array<i64: 1, 128>}, {transform_indices = @transform_11, window_bounds = array<i64: 8, 128>}]} {
    %c0 = arith.constant 0 : index
    %c0_0 = arith.constant 0 : index
    %0 = vector.load %arg1[%c0, %c0_0] : memref<8x32xf32, #tpu.memory_space<vmem>>, vector<8x32xf32>
    %cst = arith.constant dense<0.000000e+00> : vector<8xf32>
    %1 = vector.multi_reduction <add>, %0, %cst [1] : vector<8x32xf32> to vector<8xf32>
    %2 = vector.shape_cast %1 : vector<8xf32> to vector<8x1xf32>
    %cst_1 = arith.constant 3.200000e+01 : f32
    %3 = vector.broadcast %cst_1 : f32 to vector<8x1xf32>
    %4 = arith.divf %2, %3 : vector<8x1xf32>
    %5 = vector.broadcast %4 : vector<8x1xf32> to vector<8x32xf32>
    %6 = arith.subf %0, %5 : vector<8x32xf32>
    %7 = arith.mulf %6, %6 : vector<8x32xf32>
    %cst_2 = arith.constant dense<0.000000e+00> : vector<8xf32>
    %8 = vector.multi_reduction <add>, %7, %cst_2 [1] : vector<8x32xf32> to vector<8xf32>
    %9 = vector.shape_cast %8 : vector<8xf32> to vector<8x1xf32>
    %cst_3 = arith.constant 3.200000e+01 : f32
    %10 = vector.broadcast %cst_3 : f32 to vector<8x1xf32>
    %11 = arith.divf %9, %10 : vector<8x1xf32>
    %12 = vector.broadcast %4 : vector<8x1xf32> to vector<8x32xf32>
    %13 = arith.subf %0, %12 : vector<8x32xf32>
    %cst_4 = arith.constant 9.99999974E-6 : f32
    %14 = vector.broadcast %cst_4 : f32 to vector<8x1xf32>
    %15 = arith.addf %11, %14 : vector<8x1xf32>
    %16 = math.rsqrt %15 : vector<8x1xf32>
    %17 = vector.broadcast %16 : vector<8x1xf32> to vector<8x32xf32>
    %18 = arith.mulf %13, %17 : vector<8x32xf32>
    %19 = arith.truncf %18 : vector<8x32xf32> to vector<8x32xbf16>
    %c0_5 = arith.constant 0 : index
    %c0_6 = arith.constant 0 : index
    %20 = vector.load %arg2[%c0_5, %c0_6] : memref<32x256xbf16, #tpu.memory_space<vmem>>, vector<32x256xbf16>
    %cst_7 = arith.constant dense<0.000000e+00> : vector<8x256xf32>
    %21 = tpu.matmul %19, %20, %cst_7 {dimension_numbers = #tpu.dot_dimension_numbers<[1], [0], [0], [1], [0, 0, 1, 1], [], []>} : vector<8x32xbf16>, vector<32x256xbf16>, vector<8x256xf32> -> vector<8x256xf32>
    %c0_8 = arith.constant 0 : index
    %c0_9 = arith.constant 0 : index
    %22 = vector.load %arg3[%c0_8, %c0_9] : memref<1x256xf32, #tpu.memory_space<vmem>>, vector<1x256xf32>
    %23 = vector.broadcast %22 : vector<1x256xf32> to vector<8x256xf32>
    %24 = arith.addf %21, %23 : vector<8x256xf32>
    %c0_10 = arith.constant 0 : index
    %c0_11 = arith.constant 0 : index
    %25 = vector.load %arg4[%c0_10, %c0_11] : memref<1x256xf32, #tpu.memory_space<vmem>>, vector<1x256xf32>
    %c0_12 = arith.constant 0 : index
    %c0_13 = arith.constant 0 : index
    %26 = vector.load %arg5[%c0_12, %c0_13] : memref<1x256xf32, #tpu.memory_space<vmem>>, vector<1x256xf32>
    %cst_14 = arith.constant dense<0.000000e+00> : vector<8xf32>
    %27 = vector.multi_reduction <add>, %24, %cst_14 [1] : vector<8x256xf32> to vector<8xf32>
    %28 = vector.shape_cast %27 : vector<8xf32> to vector<8x1xf32>
    %cst_15 = arith.constant 2.560000e+02 : f32
    %29 = vector.broadcast %cst_15 : f32 to vector<8x1xf32>
    %30 = arith.divf %28, %29 : vector<8x1xf32>
    %31 = vector.broadcast %30 : vector<8x1xf32> to vector<8x256xf32>
    %32 = arith.subf %24, %31 : vector<8x256xf32>
    %33 = arith.mulf %32, %32 : vector<8x256xf32>
    %cst_16 = arith.constant dense<0.000000e+00> : vector<8xf32>
    %34 = vector.multi_reduction <add>, %33, %cst_16 [1] : vector<8x256xf32> to vector<8xf32>
    %35 = vector.shape_cast %34 : vector<8xf32> to vector<8x1xf32>
    %cst_17 = arith.constant 2.560000e+02 : f32
    %36 = vector.broadcast %cst_17 : f32 to vector<8x1xf32>
    %37 = arith.divf %35, %36 : vector<8x1xf32>
    %38 = vector.broadcast %30 : vector<8x1xf32> to vector<8x256xf32>
    %39 = arith.subf %24, %38 : vector<8x256xf32>
    %cst_18 = arith.constant 9.99999974E-6 : f32
    %40 = vector.broadcast %cst_18 : f32 to vector<8x1xf32>
    %41 = arith.addf %37, %40 : vector<8x1xf32>
    %42 = math.rsqrt %41 : vector<8x1xf32>
    %43 = vector.broadcast %42 : vector<8x1xf32> to vector<8x256xf32>
    %44 = arith.mulf %39, %43 : vector<8x256xf32>
    %45 = vector.broadcast %25 : vector<1x256xf32> to vector<8x256xf32>
    %46 = arith.mulf %44, %45 : vector<8x256xf32>
    %47 = vector.broadcast %26 : vector<1x256xf32> to vector<8x256xf32>
    %48 = arith.addf %46, %47 : vector<8x256xf32>
    %49 = arith.mulf %48, %48 : vector<8x256xf32>
    %50 = arith.mulf %48, %49 : vector<8x256xf32>
    %cst_19 = arith.constant 4.471500e-02 : f32
    %51 = vector.broadcast %cst_19 : f32 to vector<8x256xf32>
    %52 = arith.mulf %51, %50 : vector<8x256xf32>
    %53 = arith.addf %48, %52 : vector<8x256xf32>
    %cst_20 = arith.constant 0.797884583 : f32
    %54 = vector.broadcast %cst_20 : f32 to vector<8x256xf32>
    %55 = arith.mulf %54, %53 : vector<8x256xf32>
    %56 = math.tanh %55 : vector<8x256xf32>
    %cst_21 = arith.constant 1.000000e+00 : f32
    %57 = vector.broadcast %cst_21 : f32 to vector<8x256xf32>
    %58 = arith.addf %57, %56 : vector<8x256xf32>
    %cst_22 = arith.constant 5.000000e-01 : f32
    %59 = vector.broadcast %cst_22 : f32 to vector<8x256xf32>
    %60 = arith.mulf %59, %58 : vector<8x256xf32>
    %61 = arith.mulf %48, %60 : vector<8x256xf32>
    %62 = arith.truncf %61 : vector<8x256xf32> to vector<8x256xbf16>
    %c0_23 = arith.constant 0 : index
    %c0_24 = arith.constant 0 : index
    %63 = vector.load %arg6[%c0_23, %c0_24] : memref<256x64xbf16, #tpu.memory_space<vmem>>, vector<256x64xbf16>
    %cst_25 = arith.constant dense<0.000000e+00> : vector<8x64xf32>
    %64 = tpu.matmul %62, %63, %cst_25 {dimension_numbers = #tpu.dot_dimension_numbers<[1], [0], [0], [1], [0, 0, 1, 1], [], []>} : vector<8x256xbf16>, vector<256x64xbf16>, vector<8x64xf32> -> vector<8x64xf32>
    %c0_26 = arith.constant 0 : index
    %c0_27 = arith.constant 0 : index
    %65 = vector.load %arg7[%c0_26, %c0_27] : memref<1x64xf32, #tpu.memory_space<vmem>>, vector<1x64xf32>
    %66 = vector.broadcast %65 : vector<1x64xf32> to vector<8x64xf32>
    %67 = arith.addf %64, %66 : vector<8x64xf32>
    %c0_28 = arith.constant 0 : index
    %c0_29 = arith.constant 0 : index
    %68 = vector.load %arg8[%c0_28, %c0_29] : memref<1x64xf32, #tpu.memory_space<vmem>>, vector<1x64xf32>
    %c0_30 = arith.constant 0 : index
    %c0_31 = arith.constant 0 : index
    %69 = vector.load %arg9[%c0_30, %c0_31] : memref<1x64xf32, #tpu.memory_space<vmem>>, vector<1x64xf32>
    %cst_32 = arith.constant dense<0.000000e+00> : vector<8xf32>
    %70 = vector.multi_reduction <add>, %67, %cst_32 [1] : vector<8x64xf32> to vector<8xf32>
    %71 = vector.shape_cast %70 : vector<8xf32> to vector<8x1xf32>
    %cst_33 = arith.constant 6.400000e+01 : f32
    %72 = vector.broadcast %cst_33 : f32 to vector<8x1xf32>
    %73 = arith.divf %71, %72 : vector<8x1xf32>
    %74 = vector.broadcast %73 : vector<8x1xf32> to vector<8x64xf32>
    %75 = arith.subf %67, %74 : vector<8x64xf32>
    %76 = arith.mulf %75, %75 : vector<8x64xf32>
    %cst_34 = arith.constant dense<0.000000e+00> : vector<8xf32>
    %77 = vector.multi_reduction <add>, %76, %cst_34 [1] : vector<8x64xf32> to vector<8xf32>
    %78 = vector.shape_cast %77 : vector<8xf32> to vector<8x1xf32>
    %cst_35 = arith.constant 6.400000e+01 : f32
    %79 = vector.broadcast %cst_35 : f32 to vector<8x1xf32>
    %80 = arith.divf %78, %79 : vector<8x1xf32>
    %81 = vector.broadcast %73 : vector<8x1xf32> to vector<8x64xf32>
    %82 = arith.subf %67, %81 : vector<8x64xf32>
    %cst_36 = arith.constant 9.99999974E-6 : f32
    %83 = vector.broadcast %cst_36 : f32 to vector<8x1xf32>
    %84 = arith.addf %80, %83 : vector<8x1xf32>
    %85 = math.rsqrt %84 : vector<8x1xf32>
    %86 = vector.broadcast %85 : vector<8x1xf32> to vector<8x64xf32>
    %87 = arith.mulf %82, %86 : vector<8x64xf32>
    %88 = vector.broadcast %68 : vector<1x64xf32> to vector<8x64xf32>
    %89 = arith.mulf %87, %88 : vector<8x64xf32>
    %90 = vector.broadcast %69 : vector<1x64xf32> to vector<8x64xf32>
    %91 = arith.addf %89, %90 : vector<8x64xf32>
    %92 = arith.mulf %91, %91 : vector<8x64xf32>
    %93 = arith.mulf %91, %92 : vector<8x64xf32>
    %cst_37 = arith.constant 4.471500e-02 : f32
    %94 = vector.broadcast %cst_37 : f32 to vector<8x64xf32>
    %95 = arith.mulf %94, %93 : vector<8x64xf32>
    %96 = arith.addf %91, %95 : vector<8x64xf32>
    %cst_38 = arith.constant 0.797884583 : f32
    %97 = vector.broadcast %cst_38 : f32 to vector<8x64xf32>
    %98 = arith.mulf %97, %96 : vector<8x64xf32>
    %99 = math.tanh %98 : vector<8x64xf32>
    %cst_39 = arith.constant 1.000000e+00 : f32
    %100 = vector.broadcast %cst_39 : f32 to vector<8x64xf32>
    %101 = arith.addf %100, %99 : vector<8x64xf32>
    %cst_40 = arith.constant 5.000000e-01 : f32
    %102 = vector.broadcast %cst_40 : f32 to vector<8x64xf32>
    %103 = arith.mulf %102, %101 : vector<8x64xf32>
    %104 = arith.mulf %91, %103 : vector<8x64xf32>
    %105 = arith.truncf %104 : vector<8x64xf32> to vector<8x64xbf16>
    %c0_41 = arith.constant 0 : index
    %c0_42 = arith.constant 0 : index
    %106 = vector.load %arg10[%c0_41, %c0_42] : memref<64x128xbf16, #tpu.memory_space<vmem>>, vector<64x128xbf16>
    %cst_43 = arith.constant dense<0.000000e+00> : vector<8x128xf32>
    %107 = tpu.matmul %105, %106, %cst_43 {dimension_numbers = #tpu.dot_dimension_numbers<[1], [0], [0], [1], [0, 0, 1, 1], [], []>} : vector<8x64xbf16>, vector<64x128xbf16>, vector<8x128xf32> -> vector<8x128xf32>
    %c0_44 = arith.constant 0 : index
    %c0_45 = arith.constant 0 : index
    %108 = vector.load %arg11[%c0_44, %c0_45] : memref<1x128xf32, #tpu.memory_space<vmem>>, vector<1x128xf32>
    %109 = vector.broadcast %108 : vector<1x128xf32> to vector<8x128xf32>
    %110 = arith.addf %107, %109 : vector<8x128xf32>
    %cst_46 = arith.constant dense<0xFF800000> : vector<8xf32>
    %111 = vector.multi_reduction <maximumf>, %110, %cst_46 [1] : vector<8x128xf32> to vector<8xf32>
    %112 = vector.shape_cast %111 : vector<8xf32> to vector<8x1xf32>
    %113 = vector.broadcast %112 : vector<8x1xf32> to vector<8x128xf32>
    %114 = arith.subf %110, %113 : vector<8x128xf32>
    %115 = math.exp %114 : vector<8x128xf32>
    %cst_47 = arith.constant dense<0.000000e+00> : vector<8xf32>
    %116 = vector.multi_reduction <add>, %115, %cst_47 [1] : vector<8x128xf32> to vector<8xf32>
    %117 = vector.shape_cast %116 : vector<8xf32> to vector<8x1xf32>
    %118 = tpu.reciprocal %117 {approx = true} : vector<8x1xf32> -> vector<8x1xf32>
    %119 = vector.broadcast %118 : vector<8x1xf32> to vector<8x128xf32>
    %120 = arith.mulf %115, %119 : vector<8x128xf32>
    %121 = arith.truncf %120 : vector<8x128xf32> to vector<8x128xbf16>
    %c0_48 = arith.constant 0 : index
    %c0_49 = arith.constant 0 : index
    %122 = vector.load %arg12[%c0_48, %c0_49] : memref<8x128xbf16, #tpu.memory_space<vmem>>, vector<8x128xbf16>
    tpu.vector_store %arg12[%c0_48, %c0_49], %121 {strides = array<i32>} : memref<8x128xbf16, #tpu.memory_space<vmem>>, vector<8x128xbf16>,
    return
  }
  func.func @transform_0(%arg0: i32) -> (i32, i32) {
    %c0_i32 = arith.constant 0 : i32
    %c0_i32_0 = arith.constant 0 : i32
    return %arg0, %c0_i32 : i32, i32
  }
  func.func @transform_1(%arg0: i32) -> (i32, i32) {
    %c0_i32 = arith.constant 0 : i32
    %c0_i32_0 = arith.constant 0 : i32
    %c0_i32_1 = arith.constant 0 : i32
    return %c0_i32, %c0_i32_0 : i32, i32
  }
  func.func @transform_2(%arg0: i32) -> (i32, i32) {
    %c0_i32 = arith.constant 0 : i32
    %c0_i32_0 = arith.constant 0 : i32
    %c0_i32_1 = arith.constant 0 : i32
    return %c0_i32, %c0_i32_0 : i32, i32
  }
  func.func @transform_3(%arg0: i32) -> (i32, i32) {
    %c0_i32 = arith.constant 0 : i32
    %c0_i32_0 = arith.constant 0 : i32
    %c0_i32_1 = arith.constant 0 : i32
    return %c0_i32, %c0_i32_0 : i32, i32
  }
  func.func @transform_4(%arg0: i32) -> (i32, i32) {
    %c0_i32 = arith.constant 0 : i32
    %c0_i32_0 = arith.constant 0 : i32
    %c0_i32_1 = arith.constant 0 : i32
    return %c0_i32, %c0_i32_0 : i32, i32
  }
  func.func @transform_5(%arg0: i32) -> (i32, i32) {
    %c0_i32 = arith.constant 0 : i32
    %c0_i32_0 = arith.constant 0 : i32
    %c0_i32_1 = arith.constant 0 : i32
    return %c0_i32, %c0_i32_0 : i32, i32
  }
  func.func @transform_6(%arg0: i32) -> (i32, i32) {
    %c0_i32 = arith.constant 0 : i32
    %c0_i32_0 = arith.constant 0 : i32
    %c0_i32_1 = arith.constant 0 : i32
    return %c0_i32, %c0_i32_0 : i32, i32
  }
  func.func @transform_7(%arg0: i32) -> (i32, i32) {
    %c0_i32 = arith.constant 0 : i32
    %c0_i32_0 = arith.constant 0 : i32
    %c0_i32_1 = arith.constant 0 : i32
    return %c0_i32, %c0_i32_0 : i32, i32
  }
  func.func @transform_8(%arg0: i32) -> (i32, i32) {
    %c0_i32 = arith.constant 0 : i32
    %c0_i32_0 = arith.constant 0 : i32
    %c0_i32_1 = arith.constant 0 : i32
    return %c0_i32, %c0_i32_0 : i32, i32
  }
  func.func @transform_9(%arg0: i32) -> (i32, i32) {
    %c0_i32 = arith.constant 0 : i32
    %c0_i32_0 = arith.constant 0 : i32
    %c0_i32_1 = arith.constant 0 : i32
    return %c0_i32, %c0_i32_0 : i32, i32
  }
  func.func @transform_10(%arg0: i32) -> (i32, i32) {
    %c0_i32 = arith.constant 0 : i32
    %c0_i32_0 = arith.constant 0 : i32
    %c0_i32_1 = arith.constant 0 : i32
    return %c0_i32, %c0_i32_0 : i32, i32
  }
  func.func @transform_11(%arg0: i32) -> (i32, i32) {
    %c0_i32 = arith.constant 0 : i32
    %c0_i32_0 = arith.constant 0 : i32
    return %arg0, %c0_i32 : i32, i32
  }
}

</mosaic_0001>

<llo_original>
// kernel: mlp_policy_forward.1
$region0: #{mlp_policy_forward.1}
  #allocation0 [shape = 'u32[]', space=smem, size = 0x4, offset = 0x4, fixed_abs, tag = 'smem constant byte address 0x4 - core index']
  #allocation1 [shape = 'u32[144,128]{1,0:T(1,128)}', space=vmem, size = 0x12000, scoped, tag = 'internal scratch']
  %s0 = inlined_call_operand.vmem [shape: f32[8,32], index: 0, kind: input, shape index: {}]
  %s1 = inlined_call_operand.vmem [shape: bf16[32,256], index: 1, kind: input, shape index: {}]
  %s2 = inlined_call_operand.vmem [shape: f32[1,256], index: 2, kind: input, shape index: {}]
  %s3 = inlined_call_operand.vmem [shape: f32[1,256], index: 3, kind: input, shape index: {}]
  %s4 = inlined_call_operand.vmem [shape: f32[1,256], index: 4, kind: input, shape index: {}]
  %s5 = inlined_call_operand.vmem [shape: bf16[256,64], index: 5, kind: input, shape index: {}]
  %s6 = inlined_call_operand.vmem [shape: f32[1,64], index: 6, kind: input, shape index: {}]
  %s7 = inlined_call_operand.vmem [shape: f32[1,64], index: 7, kind: input, shape index: {}]
  %s8 = inlined_call_operand.vmem [shape: f32[1,64], index: 8, kind: input, shape index: {}]
  %s9 = inlined_call_operand.vmem [shape: bf16[64,128], index: 9, kind: input, shape index: {}]
  %s10 = inlined_call_operand.vmem [shape: f32[1,128], index: 10, kind: input, shape index: {}]
  %s11 = inlined_call_operand.vmem [shape: bf16[8,128], index: 11, kind: output, shape index: {}]
  %s12 = sld [smem:[#allocation0]]
  $region54: #{mlp_policy_forward.1} parent=0
    _
  %s14 = ssub.s32 1, %s12
  %s15 = scalar_select 0, %s14, %s12
  // Predicated region
  $region2: #{mlp_policy_forward.1} parent=0 // pred_check
    _
  $region3: #{mlp_policy_forward.1} parent=0 // pred_check_branch
    %17 = sbr.rel (0) target = $region5
  $region4: #{mlp_policy_forward.1} parent=0 // pred_region
    _
  $region5: #{mlp_policy_forward.1} parent=0 // pred_fallthru
    _
  // Predicated region
  $region6: #{mlp_policy_forward.1} parent=0 // pred_check
    _
  $region7: #{mlp_policy_forward.1} parent=0 // pred_check_branch
    %19 = sbr.rel (0) target = $region9
  $region8: #{mlp_policy_forward.1} parent=0 // pred_region
    _
  $region9: #{mlp_policy_forward.1} parent=0 // pred_fallthru
    _
  // Predicated region
  $region10: #{mlp_policy_forward.1} parent=0 // pred_check
    _
  $region11: #{mlp_policy_forward.1} parent=0 // pred_check_branch
    %21 = sbr.rel (0) target = $region13
  $region12: #{mlp_policy_forward.1} parent=0 // pred_region
    _
  $region13: #{mlp_policy_forward.1} parent=0 // pred_fallthru
    _
  // Predicated region
  $region14: #{mlp_policy_forward.1} parent=0 // pred_check
    _
  $region15: #{mlp_policy_forward.1} parent=0 // pred_check_branch
    %23 = sbr.rel (0) target = $region17
  $region16: #{mlp_policy_forward.1} parent=0 // pred_region
    _
  $region17: #{mlp_policy_forward.1} parent=0 // pred_fallthru
    _
  // Predicated region
  $region18: #{mlp_policy_forward.1} parent=0 // pred_check
    _
  $region19: #{mlp_policy_forward.1} parent=0 // pred_check_branch
    %25 = sbr.rel (0) target = $region21
  $region20: #{mlp_policy_forward.1} parent=0 // pred_region
    _
  $region21: #{mlp_policy_forward.1} parent=0 // pred_fallthru
    _
  // Predicated region
  $region22: #{mlp_policy_forward.1} parent=0 // pred_check
    _
  $region23: #{mlp_policy_forward.1} parent=0 // pred_check_branch
    %27 = sbr.rel (0) target = $region25
  $region24: #{mlp_policy_forward.1} parent=0 // pred_region
    _
  $region25: #{mlp_policy_forward.1} parent=0 // pred_fallthru
    _
  // Predicated region
  $region26: #{mlp_policy_forward.1} parent=0 // pred_check
    _
  $region27: #{mlp_policy_forward.1} parent=0 // pred_check_branch
    %29 = sbr.rel (0) target = $region29
  $region28: #{mlp_policy_forward.1} parent=0 // pred_region
    _
  $region29: #{mlp_policy_forward.1} parent=0 // pred_fallthru
    _
  // Predicated region
  $region30: #{mlp_policy_forward.1} parent=0 // pred_check
    _
  $region31: #{mlp_policy_forward.1} parent=0 // pred_check_branch
    %31 = sbr.rel (0) target = $region33
  $region32: #{mlp_policy_forward.1} parent=0 // pred_region
    _
  $region33: #{mlp_policy_forward.1} parent=0 // pred_fallthru
    _
  // Predicated region
  $region34: #{mlp_policy_forward.1} parent=0 // pred_check
    _
  $region35: #{mlp_policy_forward.1} parent=0 // pred_check_branch
    %33 = sbr.rel (0) target = $region37
  $region36: #{mlp_policy_forward.1} parent=0 // pred_region
    _
  $region37: #{mlp_policy_forward.1} parent=0 // pred_fallthru
    _
  // Predicated region
  $region38: #{mlp_policy_forward.1} parent=0 // pred_check
    _
  $region39: #{mlp_policy_forward.1} parent=0 // pred_check_branch
    %35 = sbr.rel (0) target = $region41
  $region40: #{mlp_policy_forward.1} parent=0 // pred_region
    _
  $region41: #{mlp_policy_forward.1} parent=0 // pred_fallthru
    _
  // Predicated region
  $region42: #{mlp_policy_forward.1} parent=0 // pred_check
    _
  $region43: #{mlp_policy_forward.1} parent=0 // pred_check_branch
    %37 = sbr.rel (0) target = $region45
  $region44: #{mlp_policy_forward.1} parent=0 // pred_region
    _
  $region45: #{mlp_policy_forward.1} parent=0 // pred_fallthru
    _
  %v39 = vld [vmem:[%s0] sm:$0xff]
  %vm40 = vcmask 261120
  %v41 = vsel %vm40, %v39, 0.0
  %42 = vadd.xlane.f32.xlu0 %v41
  %v43 = vpop.xlane.xlu0 %42
  %v44 = vrcp.pop 32.0
  %v45 = vmul.f32 %v43, %v44
  %v46 = vsub.f32 %v39, %v45
  %v47 = vmul.f32 %v46, %v46
  %v48 = vsel %vm40, %v47, 0.0
  %49 = vadd.xlane.f32.xlu0 %v48
  %v50 = vpop.xlane.xlu0 %49
  %v51 = vmul.f32 %v50, %v44
  %v52 = vadd.f32 %v51, 1e-05
  %v53 = vrsqrt.pop %v52
  %v54 = vmul.f32 %v46, %v53
  %v55 = vpack.c.bf16 %v54, %v54
  %v56 = vld [vmem:[%s1] sm:$0xff]
  %v57 = vld [vmem:[%s1 + $0x8] sm:$0xff]
  %v58 = vld [vmem:[%s1 + $0x10] sm:$0xff]
  %v59 = vld [vmem:[%s1 + $0x18] sm:$0xff]
  %v60 = vld [vmem:[%s2] sm:$0x3]
  %v62 = vlaneseq
  %v63 = vshrl.u32 %v62, 7
  %v64 = vsub.s32 0, %v63
  %v65 = vrot.slane %v60, %v64
  %v66 = vlaneseq
  %v67 = vshrl.u32 %v66, 7
  %v68 = vsub.s32 1, %v67
  %v69 = vrot.slane %v60, %v68
  %v76 = vunpack.c.l.b16 %v56
  %v77 = vunpack.c.h.b16 %v56
  %v78 = vunpack.c.l.b16 %v57
  %v79 = vunpack.c.h.b16 %v57
  %v80 = vunpack.c.l.b16 %v58
  %v81 = vunpack.c.h.b16 %v58
  %v82 = vunpack.c.l.b16 %v59
  %v83 = vunpack.c.h.b16 %v59
  %v84 = vpack.c.b16 %v78, %v76
  %v85 = vpack.c.b16 %v79, %v77
  %v86 = vpack.c.b16 %v82, %v80
  %v87 = vpack.c.b16 %v83, %v81
  %v93 = vsel %vm40, %v55, 0
  %95 = vmatprep.subr.bf16.mxu0 0
  %96 = vmatpush1.bf16.msra.mxu0 0
  %97 = vmatprep.subr.bf16.mxu0 0
  %98 = vmatpush1.bf16.msra.mxu0 0
  %99 = vmatprep.subr.bf16.mxu0 0
  %100 = vmatpush1.bf16.msra.mxu0 0
  %101 = vmatprep.subr.bf16.mxu0 0
  %102 = vmatpush1.bf16.msra.mxu0 0
  %103 = vmatprep.subr.bf16.mxu0 0
  %104 = vmatpush1.bf16.msra.mxu0 0
  %105 = vmatprep.subr.bf16.mxu0 0
  %106 = vmatpush1.bf16.msra.mxu0 0
  %107 = vmatprep.subr.bf16.mxu0 %v87
  %108 = vmatpush1.bf16.msra.mxu0 %v86
  %109 = vmatprep.subr.bf16.mxu0 %v85
  %110 = vmatpush1.bf16.msra.mxu0 %v84
  %111 = vmatprep.subr.bf16.mxu0 0
  %112 = vmatpush2.bf16.msra.mxu0 0
  %113 = vmatprep.subr.bf16.mxu0 0
  %114 = vmatpush2.bf16.msra.mxu0 0
  %115 = vmatprep.subr.bf16.mxu0 0
  %116 = vmatpush2.bf16.msra.mxu0 0
  %117 = vmatprep.subr.bf16.mxu0 0
  %118 = vmatpush2.bf16.msra.mxu0 0
  %119 = vmatprep.subr.bf16.mxu0 0
  %120 = vmatpush2.bf16.msra.mxu0 0
  %121 = vmatprep.subr.bf16.mxu0 0
  %122 = vmatpush2.bf16.msra.mxu0 0
  %123 = vmatprep.subr.bf16.mxu0 0
  %124 = vmatpush2.bf16.msra.mxu0 0
  %125 = vmatprep.subr.bf16.mxu0 0
  %126 = vmatpush2.bf16.msra.mxu0 0
  %127 = vmatprep.mubr.bf16.mxu0 0
  %128 = vmatmul.mubr.bf16.gmra.mxu0 %v93
  %v129 = vpop.f32.mrf.mxu0
  %v130 = vadd.f32 %v65, %v129
  %v131 = vpop.f32.mrf.mxu0
  %v132 = vadd.f32 %v69, %v131
  %v133 = vpop.f32.mrf.mxu0
  %v134 = vpop.f32.mrf.mxu0
  %135 = vdwg.mxu0
  %v136 = vld [vmem:[%s3] sm:$0x3]
  %v137 = vld [vmem:[%s4] sm:$0x3]
  %v138 = vadd.f32 %v130, %v132
  %139 = vadd.xlane.f32.xlu0 %v138
  %v140 = vpop.xlane.xlu0 %139
  %v141 = vrcp.pop 256.0
  %v142 = vmul.f32 %v140, %v141
  %v143 = vsub.f32 %v130, %v142
  %v144 = vsub.f32 %v132, %v142
  %v145 = vmul.f32 %v143, %v143
  %v146 = vmul.f32 %v144, %v144
  %v147 = vadd.f32 %v145, %v146
  %148 = vadd.xlane.f32.xlu0 %v147
  %v149 = vpop.xlane.xlu0 %148
  %v150 = vmul.f32 %v149, %v141
  %v151 = vadd.f32 %v150, 1e-05
  %v152 = vrsqrt.pop %v151
  %v153 = vmul.f32 %v143, %v152
  %v154 = vmul.f32 %v144, %v152
  %v156 = vlaneseq
  %v157 = vshrl.u32 %v156, 7
  %v158 = vsub.s32 0, %v157
  %v159 = vrot.slane %v136, %v158
  %v160 = vlaneseq
  %v161 = vshrl.u32 %v160, 7
  %v162 = vsub.s32 1, %v161
  %v163 = vrot.slane %v136, %v162
  %v166 = vmul.f32 %v153, %v159
  %v167 = vmul.f32 %v154, %v163
  %v169 = vlaneseq
  %v170 = vshrl.u32 %v169, 7
  %v171 = vsub.s32 0, %v170
  %v172 = vrot.slane %v137, %v171
  %v173 = vlaneseq
  %v174 = vshrl.u32 %v173, 7
  %v175 = vsub.s32 1, %v174
  %v176 = vrot.slane %v137, %v175
  %v179 = vadd.f32 %v166, %v172
  %v180 = vadd.f32 %v167, %v176
  %v181 = vmul.f32 %v179, %v179
  %v182 = vmul.f32 %v180, %v180
  %v183 = vmul.f32 %v179, %v181
  %v184 = vmul.f32 %v180, %v182
  %v185 = vmul.f32 %v183, 0.044715
  %v186 = vmul.f32 %v184, 0.044715
  %v187 = vadd.f32 %v179, %v185
  %v188 = vadd.f32 %v180, %v186
  %v189 = vmul.f32 %v187, 0.7978846
  %v190 = vmul.f32 %v188, 0.7978846
  %v191 = vtanh.pop %v189
  %v192 = vtanh.pop %v190
  %v193 = vadd.f32 %v191, 1.0
  %v194 = vadd.f32 %v192, 1.0
  %v195 = vmul.f32 %v193, 0.5
  %v196 = vmul.f32 %v194, 0.5
  %v197 = vmul.f32 %v179, %v195
  %v198 = vmul.f32 %v180, %v196
  %v199 = vpack.c.bf16 %v197, %v197
  %v200 = vpack.c.bf16 %v198, %v198
  %v201 = vld [vmem:[%s5] sm:$0xf]
  %v202 = vld [vmem:[%s5 + $0x4] sm:$0xf]
  %v203 = vld [vmem:[%s5 + $0x8] sm:$0xf]
  %v204 = vld [vmem:[%s5 + $0xc] sm:$0xf]
  %v205 = vld [vmem:[%s5 + $0x10] sm:$0xf]
  %v206 = vld [vmem:[%s5 + $0x14] sm:$0xf]
  %v207 = vld [vmem:[%s5 + $0x18] sm:$0xf]
  %v208 = vld [vmem:[%s5 + $0x1c] sm:$0xf]
  %v209 = vld [vmem:[%s5 + $0x20] sm:$0xf]
  %v210 = vld [vmem:[%s5 + $0x24] sm:$0xf]
  %v211 = vld [vmem:[%s5 + $0x28] sm:$0xf]
  %v212 = vld [vmem:[%s5 + $0x2c] sm:$0xf]
  %v213 = vld [vmem:[%s5 + $0x30] sm:$0xf]
  %v214 = vld [vmem:[%s5 + $0x34] sm:$0xf]
  %v215 = vld [vmem:[%s5 + $0x38] sm:$0xf]
  %v216 = vld [vmem:[%s5 + $0x3c] sm:$0xf]
  %v217 = vld [vmem:[%s5 + $0x40] sm:$0xf]
  %v218 = vld [vmem:[%s5 + $0x44] sm:$0xf]
  %v219 = vld [vmem:[%s5 + $0x48] sm:$0xf]
  %v220 = vld [vmem:[%s5 + $0x4c] sm:$0xf]
  %v221 = vld [vmem:[%s5 + $0x50] sm:$0xf]
  %v222 = vld [vmem:[%s5 + $0x54] sm:$0xf]
  %v223 = vld [vmem:[%s5 + $0x58] sm:$0xf]
  %v224 = vld [vmem:[%s5 + $0x5c] sm:$0xf]
  %v225 = vld [vmem:[%s5 + $0x60] sm:$0xf]
  %v226 = vld [vmem:[%s5 + $0x64] sm:$0xf]
  %v227 = vld [vmem:[%s5 + $0x68] sm:$0xf]
  %v228 = vld [vmem:[%s5 + $0x6c] sm:$0xf]
  %v229 = vld [vmem:[%s5 + $0x70] sm:$0xf]
  %v230 = vld [vmem:[%s5 + $0x74] sm:$0xf]
  %v231 = vld [vmem:[%s5 + $0x78] sm:$0xf]
  %v232 = vld [vmem:[%s5 + $0x7c] sm:$0xf]
  %v233 = vld [vmem:[%s6] sm:$0x1]
  %v235 = vlaneseq
  %v236 = vshrl.u32 %v235, 7
  %v237 = vsub.s32 0, %v236
  %v238 = vrot.slane %v233, %v237
  %v272 = vunpack.c.l.b16 %v201
  %v273 = vunpack.c.l.b16 %v202
  %v274 = vunpack.c.l.b16 %v203
  %v275 = vunpack.c.l.b16 %v204
  %v276 = vunpack.c.l.b16 %v205
  %v277 = vunpack.c.l.b16 %v206
  %v278 = vunpack.c.l.b16 %v207
  %v279 = vunpack.c.l.b16 %v208
  %v280 = vunpack.c.l.b16 %v209
  %v281 = vunpack.c.l.b16 %v210
  %v282 = vunpack.c.l.b16 %v211
  %v283 = vunpack.c.l.b16 %v212
  %v284 = vunpack.c.l.b16 %v213
  %v285 = vunpack.c.l.b16 %v214
  %v286 = vunpack.c.l.b16 %v215
  %v287 = vunpack.c.l.b16 %v216
  %v288 = vunpack.c.l.b16 %v217
  %v289 = vunpack.c.l.b16 %v218
  %v290 = vunpack.c.l.b16 %v219
  %v291 = vunpack.c.l.b16 %v220
  %v292 = vunpack.c.l.b16 %v221
  %v293 = vunpack.c.l.b16 %v222
  %v294 = vunpack.c.l.b16 %v223
  %v295 = vunpack.c.l.b16 %v224
  %v296 = vunpack.c.l.b16 %v225
  %v297 = vunpack.c.l.b16 %v226
  %v298 = vunpack.c.l.b16 %v227
  %v299 = vunpack.c.l.b16 %v228
  %v300 = vunpack.c.l.b16 %v229
  %v301 = vunpack.c.l.b16 %v230
  %v302 = vunpack.c.l.b16 %v231
  %v303 = vunpack.c.l.b16 %v232
  %v304 = vpack.c.b16 %v273, %v272
  %v305 = vpack.c.b16 %v275, %v274
  %v306 = vpack.c.b16 %v277, %v276
  %v307 = vpack.c.b16 %v279, %v278
  %v308 = vpack.c.b16 %v281, %v280
  %v309 = vpack.c.b16 %v283, %v282
  %v310 = vpack.c.b16 %v285, %v284
  %v311 = vpack.c.b16 %v287, %v286
  %v312 = vpack.c.b16 %v289, %v288
  %v313 = vpack.c.b16 %v291, %v290
  %v314 = vpack.c.b16 %v293, %v292
  %v315 = vpack.c.b16 %v295, %v294
  %v316 = vpack.c.b16 %v297, %v296
  %v317 = vpack.c.b16 %v299, %v298
  %v318 = vpack.c.b16 %v301, %v300
  %v319 = vpack.c.b16 %v303, %v302
  %336 = vmatprep.subr.bf16.mxu0 0
  %337 = vmatpush1.bf16.msra.mxu0 %v311
  %338 = vmatprep.subr.bf16.mxu0 0
  %339 = vmatpush1.bf16.msra.mxu0 %v310
  %340 = vmatprep.subr.bf16.mxu0 0
  %341 = vmatpush1.bf16.msra.mxu0 %v309
  %342 = vmatprep.subr.bf16.mxu0 0
  %343 = vmatpush1.bf16.msra.mxu0 %v308
  %344 = vmatprep.subr.bf16.mxu0 0
  %345 = vmatpush1.bf16.msra.mxu0 %v307
  %346 = vmatprep.subr.bf16.mxu0 0
  %347 = vmatpush1.bf16.msra.mxu0 %v306
  %348 = vmatprep.subr.bf16.mxu0 0
  %349 = vmatpush1.bf16.msra.mxu0 %v305
  %350 = vmatprep.subr.bf16.mxu0 0
  %351 = vmatpush1.bf16.msra.mxu0 %v304
  %352 = vmatprep.subr.bf16.mxu0 0
  %353 = vmatpush2.bf16.msra.mxu0 %v319
  %354 = vmatprep.subr.bf16.mxu0 0
  %355 = vmatpush2.bf16.msra.mxu0 %v318
  %356 = vmatprep.subr.bf16.mxu0 0
  %357 = vmatpush2.bf16.msra.mxu0 %v317
  %358 = vmatprep.subr.bf16.mxu0 0
  %359 = vmatpush2.bf16.msra.mxu0 %v316
  %360 = vmatprep.subr.bf16.mxu0 0
  %361 = vmatpush2.bf16.msra.mxu0 %v315
  %362 = vmatprep.subr.bf16.mxu0 0
  %363 = vmatpush2.bf16.msra.mxu0 %v314
  %364 = vmatprep.subr.bf16.mxu0 0
  %365 = vmatpush2.bf16.msra.mxu0 %v313
  %366 = vmatprep.subr.bf16.mxu0 0
  %367 = vmatpush2.bf16.msra.mxu0 %v312
  %368 = vmatprep.mubr.bf16.mxu0 %v200
  %369 = vmatmul.mubr.bf16.gmra.mxu0 %v199
  %v370 = vpop.f32.mrf.mxu0
  %v371 = vadd.f32 %v238, %v370
  %v372 = vpop.f32.mrf.mxu0
  %v373 = vpop.f32.mrf.mxu0
  %v374 = vpop.f32.mrf.mxu0
  %375 = vdwg.mxu0
  %v376 = vld [vmem:[%s7] sm:$0x1]
  %v377 = vld [vmem:[%s8] sm:$0x1]
  %vm378 = vcmask 523264
  %v379 = vsel %vm378, %v371, 0.0
  %380 = vadd.xlane.f32.xlu0 %v379
  %v381 = vpop.xlane.xlu0 %380
  %v382 = vrcp.pop 64.0
  %v383 = vmul.f32 %v381, %v382
  %v384 = vsub.f32 %v371, %v383
  %v385 = vmul.f32 %v384, %v384
  %v386 = vsel %vm378, %v385, 0.0
  %387 = vadd.xlane.f32.xlu0 %v386
  %v388 = vpop.xlane.xlu0 %387
  %v389 = vmul.f32 %v388, %v382
  %v390 = vadd.f32 %v389, 1e-05
  %v391 = vrsqrt.pop %v390
  %v392 = vmul.f32 %v384, %v391
  %v394 = vlaneseq
  %v395 = vshrl.u32 %v394, 7
  %v396 = vsub.s32 0, %v395
  %v397 = vrot.slane %v376, %v396
  %v399 = vmul.f32 %v392, %v397
  %v401 = vlaneseq
  %v402 = vshrl.u32 %v401, 7
  %v403 = vsub.s32 0, %v402
  %v404 = vrot.slane %v377, %v403
  %v406 = vadd.f32 %v399, %v404
  %v407 = vmul.f32 %v406, %v406
  %v408 = vmul.f32 %v406, %v407
  %v409 = vmul.f32 %v408, 0.044715
  %v410 = vadd.f32 %v406, %v409
  %v411 = vmul.f32 %v410, 0.7978846
  %v412 = vtanh.pop %v411
  %v413 = vadd.f32 %v412, 1.0
  %v414 = vmul.f32 %v413, 0.5
  %v415 = vmul.f32 %v406, %v414
  %v416 = vpack.c.bf16 %v415, %v415
  %v417 = vld [vmem:[%s9] sm:$0xf]
  %v418 = vld [vmem:[%s9 + $0x4] sm:$0xf]
  %v419 = vld [vmem:[%s9 + $0x8] sm:$0xf]
  %v420 = vld [vmem:[%s9 + $0xc] sm:$0xf]
  %v421 = vld [vmem:[%s9 + $0x10] sm:$0xf]
  %v422 = vld [vmem:[%s9 + $0x14] sm:$0xf]
  %v423 = vld [vmem:[%s9 + $0x18] sm:$0xf]
  %v424 = vld [vmem:[%s9 + $0x1c] sm:$0xf]
  %v425 = vld [vmem:[%s10] sm:$0x1]
  %v427 = vlaneseq
  %v428 = vshrl.u32 %v427, 7
  %v429 = vsub.s32 0, %v428
  %v430 = vrot.slane %v425, %v429
  %v440 = vunpack.c.l.b16 %v417
  %v441 = vunpack.c.l.b16 %v418
  %v442 = vunpack.c.l.b16 %v419
  %v443 = vunpack.c.l.b16 %v420
  %v444 = vunpack.c.l.b16 %v421
  %v445 = vunpack.c.l.b16 %v422
  %v446 = vunpack.c.l.b16 %v423
  %v447 = vunpack.c.l.b16 %v424
  %v448 = vpack.c.b16 %v441, %v440
  %v449 = vpack.c.b16 %v443, %v442
  %v450 = vpack.c.b16 %v445, %v444
  %v451 = vpack.c.b16 %v447, %v446
  %v457 = vsel %vm378, %v416, 0
  %459 = vmatprep.subr.bf16.mxu0 0
  %460 = vmatpush1.bf16.msra.mxu0 0
  %461 = vmatprep.subr.bf16.mxu0 0
  %462 = vmatpush1.bf16.msra.mxu0 0
  %463 = vmatprep.subr.bf16.mxu0 0
  %464 = vmatpush1.bf16.msra.mxu0 0
  %465 = vmatprep.subr.bf16.mxu0 0
  %466 = vmatpush1.bf16.msra.mxu0 0
  %467 = vmatprep.subr.bf16.mxu0 0
  %468 = vmatpush1.bf16.msra.mxu0 %v451
  %469 = vmatprep.subr.bf16.mxu0 0
  %470 = vmatpush1.bf16.msra.mxu0 %v450
  %471 = vmatprep.subr.bf16.mxu0 0
  %472 = vmatpush1.bf16.msra.mxu0 %v449
  %473 = vmatprep.subr.bf16.mxu0 0
  %474 = vmatpush1.bf16.msra.mxu0 %v448
  %475 = vmatprep.subr.bf16.mxu0 0
  %476 = vmatpush2.bf16.msra.mxu0 0
  %477 = vmatprep.subr.bf16.mxu0 0
  %478 = vmatpush2.bf16.msra.mxu0 0
  %479 = vmatprep.subr.bf16.mxu0 0
  %480 = vmatpush2.bf16.msra.mxu0 0
  %481 = vmatprep.subr.bf16.mxu0 0
  %482 = vmatpush2.bf16.msra.mxu0 0
  %483 = vmatprep.subr.bf16.mxu0 0
  %484 = vmatpush2.bf16.msra.mxu0 0
  %485 = vmatprep.subr.bf16.mxu0 0
  %486 = vmatpush2.bf16.msra.mxu0 0
  %487 = vmatprep.subr.bf16.mxu0 0
  %488 = vmatpush2.bf16.msra.mxu0 0
  %489 = vmatprep.subr.bf16.mxu0 0
  %490 = vmatpush2.bf16.msra.mxu0 0
  %491 = vmatprep.mubr.bf16.mxu0 0
  %492 = vmatmul.mubr.bf16.gmra.mxu0 %v457
  %v493 = vpop.f32.mrf.mxu0
  %v494 = vadd.f32 %v430, %v493
  %v495 = vpop.f32.mrf.mxu0
  %v496 = vpop.f32.mrf.mxu0
  %v497 = vpop.f32.mrf.mxu0
  %498 = vdwg.mxu0
  %499 = vmax.xlane.f32.xlu0 %v494
  %v500 = vpop.xlane.xlu0 %499
  %v501 = vsub.f32 %v494, %v500
  %v502 = vmul.f32 %v501, 1.442695
  %v503 = vpow.pop %v502
  %504 = vadd.xlane.f32.xlu0 %v503
  %v505 = vpop.xlane.xlu0 %504
  %v506 = vrcp.pop %v505
  %v507 = vmul.f32 %v503, %v506
  %v508 = vpack.c.bf16 %v507, %v507
  %509 = vst [vmem:[%s11] sm:$0xf] %v508
  // Predicated region
  $region46: #{mlp_policy_forward.1} parent=0 // pred_check
    _
  $region47: #{mlp_policy_forward.1} parent=0 // pred_check_branch
    %511 = sbr.rel (0) target = $region49
  $region48: #{mlp_policy_forward.1} parent=0 // pred_region
    _
  $region49: #{mlp_policy_forward.1} parent=0 // pred_fallthru
    _
  // Predicated region
  $region50: #{mlp_policy_forward.1} parent=0 // pred_check
    _
  $region51: #{mlp_policy_forward.1} parent=0 // pred_check_branch
    %513 = sbr.rel (0) target = $region53
  $region52: #{mlp_policy_forward.1} parent=0 // pred_region
    _
  $region53: #{mlp_policy_forward.1} parent=0 // pred_fallthru
    _

</llo_original>
